<compile_context>
chip_gen: v7x
topology: tpu7x:2x2x1
jax: 0.10.0
libtpu: 0.0.40
codegen_flags: <defaults>
</compile_context>

<pallas_src>
import jax
import jax.numpy as jnp
import numpy as np
from jax.experimental import pallas as pl
from jax.experimental.pallas import tpu as pltpu


def _concat_kernel(*refs):
    """Copy each input block into its channel slice of the output block.

    refs = (x0_ref, ..., xk_ref, o_ref).  Each x_ref is (1, C_i, M) and
    o_ref is (1, sum(C_i), M).  M (flattened trailing dims) lives in the
    lane dimension, so every store is lane-dense; the channel offset only
    shifts sublanes (static slices, handled by Mosaic).
    """
    *in_refs, o_ref = refs
    off = 0
    for r in in_refs:
        c = r.shape[1]
        o_ref[:, off:off + c, :] = r[...]
        off += c


def concat_pallas(xs, dim=1):
    """Pallas equivalent of torch.cat(xs, dim) for same-rank arrays."""
    xs = list(xs)
    nd = xs[0].ndim
    if dim < 0:
        dim += nd
    shapes = [tuple(x.shape) for x in xs]
    dtype = xs[0].dtype

    lead = int(np.prod(shapes[0][:dim], dtype=np.int64)) if dim > 0 else 1
    trail = int(np.prod(shapes[0][dim + 1:], dtype=np.int64)) if dim + 1 < nd else 1
    cs = [s[dim] for s in shapes]
    c_total = int(sum(cs))

    # Lane-dense 3-D view: (lead, C_i, trail).  These reshapes are
    # layout-preserving on contiguous arrays -> no extra HBM pass.
    xs3 = [x.reshape(lead, c, trail) for x, c in zip(xs, cs)]

    in_specs = [pl.BlockSpec((1, c, trail), lambda n: (n, 0, 0)) for c in cs]

    out3 = pl.pallas_call(
        _concat_kernel,
        out_shape=jax.ShapeDtypeStruct((lead, c_total, trail), dtype),
        grid_spec=pltpu.PrefetchScalarGridSpec(
            num_scalar_prefetch=0,
            grid=(lead,),
            in_specs=in_specs,
            out_specs=pl.BlockSpec((1, c_total, trail), lambda n: (n, 0, 0)),
        ),
        compiler_params=pltpu.CompilerParams(
            dimension_semantics=("parallel",)),
    )(*xs3)

    out_shape = shapes[0][:dim] + (c_total,) + shapes[0][dim + 1:]
    return out3.reshape(out_shape)


if __name__ == "__main__":
    key = jax.random.PRNGKey(0)
    k0, k1, k2 = jax.random.split(key, 3)

    # Concat(dimension=1) over a list of NCHW feature maps (YOLO-style skip
    # connection): shapes differ only in the channel dim.
    x0 = jax.random.normal(k0, (2, 4, 16, 16), dtype=jnp.float32)
    x1 = jax.random.normal(k1, (2, 8, 16, 16), dtype=jnp.float32)
    x2 = jax.random.normal(k2, (2, 4, 16, 16), dtype=jnp.float32)

    out = concat_pallas([x0, x1, x2], dim=1)
    out = jax.block_until_ready(out)

    ref = jnp.concatenate([x0, x1, x2], axis=1)
    np.testing.assert_array_equal(np.asarray(out), np.asarray(ref))
    assert out.shape == (2, 16, 16, 16)

    print("KERNEL_OK")
</pallas_src>

<mosaic_0001>
module attributes {stable_mosaic.version = 11 : i64} {
  func.func @_concat_kernel(%arg0: i32, %arg1: memref<1x4x256xf32, #tpu.memory_space<vmem>>, %arg2: memref<1x8x256xf32, #tpu.memory_space<vmem>>, %arg3: memref<1x4x256xf32, #tpu.memory_space<vmem>>, %arg4: memref<1x16x256xf32, #tpu.memory_space<vmem>>) attributes {dimension_semantics = [#tpu.dimension_semantics<parallel>], iteration_bounds = array<i64: 2>, scalar_prefetch = 0 : i64, scratch_operands = 0 : i64, tpu.core_type = #tpu.core_type<tc>, window_params = [{transform_indices = @transform_0, window_bounds = array<i64: 1, 4, 256>}, {transform_indices = @transform_1, window_bounds = array<i64: 1, 8, 256>}, {transform_indices = @transform_2, window_bounds = array<i64: 1, 4, 256>}, {transform_indices = @transform_3, window_bounds = array<i64: 1, 16, 256>}]} {
    %c0 = arith.constant 0 : index
    %c0_0 = arith.constant 0 : index
    %c0_1 = arith.constant 0 : index
    %0 = vector.load %arg1[%c0, %c0_0, %c0_1] : memref<1x4x256xf32, #tpu.memory_space<vmem>>, vector<1x4x256xf32>
    %c0_2 = arith.constant 0 : index
    %c0_3 = arith.constant 0 : index
    %c0_4 = arith.constant 0 : index
    %1 = vector.load %arg4[%c0_2, %c0_3, %c0_4] : memref<1x16x256xf32, #tpu.memory_space<vmem>>, vector<1x4x256xf32>
    tpu.vector_store %arg4[%c0_2, %c0_3, %c0_4], %0 {strides = array<i32>} : memref<1x16x256xf32, #tpu.memory_space<vmem>>, vector<1x4x256xf32>,
    %c0_5 = arith.constant 0 : index
    %c0_6 = arith.constant 0 : index
    %c0_7 = arith.constant 0 : index
    %2 = vector.load %arg2[%c0_5, %c0_6, %c0_7] : memref<1x8x256xf32, #tpu.memory_space<vmem>>, vector<1x8x256xf32>
    %c0_8 = arith.constant 0 : index
    %c4 = arith.constant 4 : index
    %c0_9 = arith.constant 0 : index
    %3 = vector.load %arg4[%c0_8, %c4, %c0_9] : memref<1x16x256xf32, #tpu.memory_space<vmem>>, vector<1x8x256xf32>
    tpu.vector_store %arg4[%c0_8, %c4, %c0_9], %2 {strides = array<i32>} : memref<1x16x256xf32, #tpu.memory_space<vmem>>, vector<1x8x256xf32>,
    %c0_10 = arith.constant 0 : index
    %c0_11 = arith.constant 0 : index
    %c0_12 = arith.constant 0 : index
    %4 = vector.load %arg3[%c0_10, %c0_11, %c0_12] : memref<1x4x256xf32, #tpu.memory_space<vmem>>, vector<1x4x256xf32>
    %c0_13 = arith.constant 0 : index
    %c12 = arith.constant 12 : index
    %c0_14 = arith.constant 0 : index
    %5 = vector.load %arg4[%c0_13, %c12, %c0_14] : memref<1x16x256xf32, #tpu.memory_space<vmem>>, vector<1x4x256xf32>
    tpu.vector_store %arg4[%c0_13, %c12, %c0_14], %4 {strides = array<i32>} : memref<1x16x256xf32, #tpu.memory_space<vmem>>, vector<1x4x256xf32>,
    return
  }
  func.func @transform_0(%arg0: i32) -> (i32, i32, i32) {
    %c0_i32 = arith.constant 0 : i32
    %c0_i32_0 = arith.constant 0 : i32
    %c0_i32_1 = arith.constant 0 : i32
    return %arg0, %c0_i32, %c0_i32_0 : i32, i32, i32
  }
  func.func @transform_1(%arg0: i32) -> (i32, i32, i32) {
    %c0_i32 = arith.constant 0 : i32
    %c0_i32_0 = arith.constant 0 : i32
    %c0_i32_1 = arith.constant 0 : i32
    return %arg0, %c0_i32, %c0_i32_0 : i32, i32, i32
  }
  func.func @transform_2(%arg0: i32) -> (i32, i32, i32) {
    %c0_i32 = arith.constant 0 : i32
    %c0_i32_0 = arith.constant 0 : i32
    %c0_i32_1 = arith.constant 0 : i32
    return %arg0, %c0_i32, %c0_i32_0 : i32, i32, i32
  }
  func.func @transform_3(%arg0: i32) -> (i32, i32, i32) {
    %c0_i32 = arith.constant 0 : i32
    %c0_i32_0 = arith.constant 0 : i32
    %c0_i32_1 = arith.constant 0 : i32
    return %arg0, %c0_i32, %c0_i32_0 : i32, i32, i32
  }
}

</mosaic_0001>

<llo_original>
// kernel: tpu_custom_call.1
$region0: #{tpu_custom_call.1}
  #allocation0 [shape = 'u32[]', space=smem, size = 0x4, offset = 0x4, fixed_abs, tag = 'smem constant byte address 0x4 - core index']
  #allocation1 [shape = 'u32[144,128]{1,0:T(1,128)}', space=vmem, size = 0x12000, scoped, tag = 'internal scratch']
  %s0 = inlined_call_operand.hbm [shape: f32[2,4,256], index: 0, kind: input, shape index: {}]
  %s1 = inlined_call_operand.hbm [shape: f32[2,8,256], index: 1, kind: input, shape index: {}]
  %s2 = inlined_call_operand.hbm [shape: f32[2,4,256], index: 2, kind: input, shape index: {}]
  %s3 = inlined_call_operand.hbm [shape: f32[2,16,256], index: 3, kind: output, shape index: {}]
  %s4 = sld [smem:[#allocation0]]
  $region57: #{tpu_custom_call.1} parent=0
    _
  %s6 = ssub.s32 1, %s4
  %s7 = scalar_select 0, %s6, %s4
  $region1: #{tpu_custom_call.1} parent=0
    #allocation2 [shape = 'u8[8192]{0}', space=vmem, size = 0x2000, scoped, tag = 'input window, operand 0']
    #allocation3 [shape = 's32[2]{0}', space=sflag, size = 0x8, scoped, tag = 'scoped memory for tpu_custom_call.1']
    #allocation4 [shape = 's32[2]{0}', space=sflag, size = 0x8, scoped, tag = 'scoped memory for tpu_custom_call.1']
    #allocation5 [shape = 'u8[16384]{0}', space=vmem, size = 0x4000, scoped, tag = 'input window, operand 1']
    #allocation6 [shape = 's32[2]{0}', space=sflag, size = 0x8, scoped, tag = 'scoped memory for tpu_custom_call.1']
    #allocation7 [shape = 'u8[8192]{0}', space=vmem, size = 0x2000, scoped, tag = 'input window, operand 2']
    #allocation8 [shape = 'u8[32768]{0}', space=vmem, size = 0x8000, scoped, tag = 'output window, operand 0']
    %8 = vsyncpa [#allocation3], 0
    %s9 = scalar_lea.sflag [#allocation3], 1
    %10 = vsyncpa %s9, 0
    %11 = vsyncpa [#allocation6], 0
    %s12 = scalar_lea.sflag [#allocation6], 1
    %13 = vsyncpa %s12, 0
    %14 = vsyncpa [#allocation4], 0
    %s15 = scalar_lea.sflag [#allocation4], 1
    %16 = vsyncpa %s15, 0
    loop: start=0, step=1, limit=4
    $region2: #{tpu_custom_call.1} parent=1 // loop_pre_header
      _
    $region3: #{tpu_custom_call.1} parent=1 // loop_header
      %s18 = sphi 0, %s22
      %p19 = scmp.ge.s32.totalorder %s18, 4
      %s28 = sphi 0, %s30
      %s31 = sphi 0, %s28
      %s32 = sphi 0, %s31
      %s48 = sphi 0, %s32
      %s54 = sphi 0, %s56
      %s57 = sphi 0, %s54
      %s58 = sphi 0, %s57
      %s74 = sphi 0, %s58
      %s80 = sphi 0, %s82
      %s83 = sphi 0, %s80
      %s84 = sphi 0, %s83
      %s100 = sphi 0, %s84
      %s106 = sphi 0, %s108
      %s109 = sphi 0, %s106
      %s110 = sphi 0, %s109
      %s126 = sphi 0, %s110
    $region4: #{tpu_custom_call.1} parent=1 // loop_header_branch
      %21 = sbr.rel (%p19) target = $region8
    $region5: #{tpu_custom_call.1} parent=1 // loop_body
      %s23 = ssub.s32 %s18, 1
      %s24 = ssub.s32 %s18, 2
      %s25 = sadd.s32 %s18, 1
      %s26 = ssub.s32 %s18, %s25
      %p27 = scmp.eq.s32.totalorder %s26, 0
      %s29 = sadd.s32 %s28, 1
      %s30 = scalar_select %p27, %s28, %s29
      %p33 = pneg %p27
      %p34 = scmp.eq.s32.totalorder %s18, 1
      %p35 = por %p33, %p34
      %p36 = scmp.ne.s32.totalorder %s28, %s31
      %p37 = scmp.eq.s32.totalorder %s18, 0
      %p38 = por %p36, %p37
      %p39 = scmp.ne.s32.totalorder %s28, %s31
      %p40 = scmp.eq.s32.totalorder %s23, 1
      %p41 = por %p39, %p40
      %p42 = scmp.ne.s32.totalorder %s31, %s32
      %p43 = scmp.eq.s32.totalorder %s23, 0
      %p44 = por %p42, %p43
      %p45 = scmp.ne.s32.totalorder %s31, %s32
      %p46 = scmp.eq.s32.totalorder %s24, 1
      %p47 = por %p45, %p46
      %p49 = scmp.ne.s32.totalorder %s32, %s48
      %p50 = scmp.eq.s32.totalorder %s24, 0
      %p51 = por %p49, %p50
      %s52 = ssub.s32 %s18, %s25
      %p53 = scmp.eq.s32.totalorder %s52, 0
      %s55 = sadd.s32 %s54, 1
      %s56 = scalar_select %p53, %s54, %s55
      %p59 = pneg %p53
      %p60 = scmp.eq.s32.totalorder %s18, 1
      %p61 = por %p59, %p60
      %p62 = scmp.ne.s32.totalorder %s54, %s57
      %p63 = scmp.eq.s32.totalorder %s18, 0
      %p64 = por %p62, %p63
      %p65 = scmp.ne.s32.totalorder %s54, %s57
      %p66 = scmp.eq.s32.totalorder %s23, 1
      %p67 = por %p65, %p66
      %p68 = scmp.ne.s32.totalorder %s57, %s58
      %p69 = scmp.eq.s32.totalorder %s23, 0
      %p70 = por %p68, %p69
      %p71 = scmp.ne.s32.totalorder %s57, %s58
      %p72 = scmp.eq.s32.totalorder %s24, 1
      %p73 = por %p71, %p72
      %p75 = scmp.ne.s32.totalorder %s58, %s74
      %p76 = scmp.eq.s32.totalorder %s24, 0
      %p77 = por %p75, %p76
      %s78 = ssub.s32 %s18, %s25
      %p79 = scmp.eq.s32.totalorder %s78, 0
      %s81 = sadd.s32 %s80, 1
      %s82 = scalar_select %p79, %s80, %s81
      %p85 = pneg %p79
      %p86 = scmp.eq.s32.totalorder %s18, 1
      %p87 = por %p85, %p86
      %p88 = scmp.ne.s32.totalorder %s80, %s83
      %p89 = scmp.eq.s32.totalorder %s18, 0
      %p90 = por %p88, %p89
      %p91 = scmp.ne.s32.totalorder %s80, %s83
      %p92 = scmp.eq.s32.totalorder %s23, 1
      %p93 = por %p91, %p92
      %p94 = scmp.ne.s32.totalorder %s83, %s84
      %p95 = scmp.eq.s32.totalorder %s23, 0
      %p96 = por %p94, %p95
      %p97 = scmp.ne.s32.totalorder %s83, %s84
      %p98 = scmp.eq.s32.totalorder %s24, 1
      %p99 = por %p97, %p98
      %p101 = scmp.ne.s32.totalorder %s84, %s100
      %p102 = scmp.eq.s32.totalorder %s24, 0
      %p103 = por %p101, %p102
      %s104 = ssub.s32 %s18, %s25
      %p105 = scmp.eq.s32.totalorder %s104, 0
      %s107 = sadd.s32 %s106, 1
      %s108 = scalar_select %p105, %s106, %s107
      %p111 = pneg %p105
      %p112 = scmp.eq.s32.totalorder %s18, 1
      %p113 = por %p111, %p112
      %p114 = scmp.ne.s32.totalorder %s106, %s109
      %p115 = scmp.eq.s32.totalorder %s18, 0
      %p116 = por %p114, %p115
      %p117 = scmp.ne.s32.totalorder %s106, %s109
      %p118 = scmp.eq.s32.totalorder %s23, 1
      %p119 = por %p117, %p118
      %p120 = scmp.ne.s32.totalorder %s109, %s110
      %p121 = scmp.eq.s32.totalorder %s23, 0
      %p122 = por %p120, %p121
      %p123 = scmp.ne.s32.totalorder %s109, %s110
      %p124 = scmp.eq.s32.totalorder %s24, 1
      %p125 = por %p123, %p124
      %p127 = scmp.ne.s32.totalorder %s110, %s126
      %p128 = scmp.eq.s32.totalorder %s24, 0
      %p129 = por %p127, %p128
      %p130 = scmp.le.s32.totalorder 1, %s18
      %p131 = scmp.lt.s32.totalorder %s18, 3
      %p132 = pnand %p130, %p131
      %p133 = pneg %p132
      // Predicated region
      $region9: #{tpu_custom_call.1} parent=5 // pred_check
        _
      $region10: #{tpu_custom_call.1} parent=5 // pred_check_branch
        %135 = sbr.rel (%p132) target = $region12
      $region11: #{tpu_custom_call.1} parent=5 // pred_region
        %s136 = ssub.s32 %s18, 1
      $region12: #{tpu_custom_call.1} parent=5 // pred_fallthru
        _
      %p137 = scmp.lt.s32.totalorder %s18, 2
      // Predicated region
      $region13: #{tpu_custom_call.1} parent=5 // pred_check
        %p138 = pneg %p137
      $region14: #{tpu_custom_call.1} parent=5 // pred_check_branch
        %140 = sbr.rel (%p138) target = $region16
      $region15: #{tpu_custom_call.1} parent=5 // pred_region
        // Predicated region
        $region17: #{tpu_custom_call.1} parent=15 // pred_check
          %p141 = pneg %p38
        $region18: #{tpu_custom_call.1} parent=15 // pred_check_branch
          %143 = sbr.rel (%p141) target = $region20
        $region19: #{tpu_custom_call.1} parent=15 // pred_region
          %s144 = sand.u32 %s28, 1
          %s145 = scalar_lea.sflag [#allocation3], %s144
          %s146 = sand.u32 %s28, 1
          %s147 = smul.addr %s146, 8
          %s148 = scalar_lea.vmem [#allocation2], %s147
          %s150 = ssub.s32 128, 128
          %151 = vsyncadd %s145, %s150
          %s152 = smul.addr %s18, 2
          %s153 = smul.addr %s152, 64
          %s154 = scalar_lea.hbm %s0, %s153
          %s156 = sshll.u32 %s148, 4
          %s157 = int_to_ptr.vmem [resolvable:$true] %s156
          %159 = dma.hbm_to_vmem [thread:$0]  %s154, 128, %s157, %s145
        $region20: #{tpu_custom_call.1} parent=15 // pred_fallthru
          _
        // Predicated region
        $region21: #{tpu_custom_call.1} parent=15 // pred_check
          %p160 = pneg %p64
        $region22: #{tpu_custom_call.1} parent=15 // pred_check_branch
          %162 = sbr.rel (%p160) target = $region24
        $region23: #{tpu_custom_call.1} parent=15 // pred_region
          %s163 = sand.u32 %s18, 1
          %s164 = scalar_lea.sflag [#allocation6], %s163
          %s165 = sand.u32 %s54, 1
          %s166 = smul.addr %s165, 16
          %s167 = scalar_lea.vmem [#allocation5], %s166
          %s169 = ssub.s32 256, 256
          %170 = vsyncadd %s164, %s169
          %s171 = smul.addr %s18, 2
          %s172 = smul.addr %s171, 128
          %s173 = scalar_lea.hbm %s1, %s172
          %s175 = sshll.u32 %s167, 4
          %s176 = int_to_ptr.vmem [resolvable:$true] %s175
          %178 = dma.hbm_to_vmem [thread:$0]  %s173, 256, %s176, %s164
        $region24: #{tpu_custom_call.1} parent=15 // pred_fallthru
          _
        // Predicated region
        $region25: #{tpu_custom_call.1} parent=15 // pred_check
          %p179 = pneg %p90
        $region26: #{tpu_custom_call.1} parent=15 // pred_check_branch
          %181 = sbr.rel (%p179) target = $region28
        $region27: #{tpu_custom_call.1} parent=15 // pred_region
          %s182 = sand.u32 %s18, 1
          %s183 = scalar_lea.sflag [#allocation6], %s182
          %s184 = sand.u32 %s80, 1
          %s185 = smul.addr %s184, 8
          %s186 = scalar_lea.vmem [#allocation7], %s185
          %s188 = ssub.s32 128, 128
          %189 = vsyncadd %s183, %s188
          %s190 = smul.addr %s18, 2
          %s191 = smul.addr %s190, 64
          %s192 = scalar_lea.hbm %s2, %s191
          %s194 = sshll.u32 %s186, 4
          %s195 = int_to_ptr.vmem [resolvable:$true] %s194
          %197 = dma.hbm_to_vmem [thread:$0]  %s192, 128, %s195, %s183
        $region28: #{tpu_custom_call.1} parent=15 // pred_fallthru
          _
      $region16: #{tpu_custom_call.1} parent=5 // pred_fallthru
        _
      %p198 = scmp.le.s32.totalorder 1, %s18
      %p199 = scmp.lt.s32.totalorder %s18, 3
      %p200 = pnand %p198, %p199
      %p201 = pneg %p200
      // Predicated region
      $region29: #{tpu_custom_call.1} parent=5 // pred_check
        _
      $region30: #{tpu_custom_call.1} parent=5 // pred_check_branch
        %203 = sbr.rel (%p200) target = $region32
      $region31: #{tpu_custom_call.1} parent=5 // pred_region
        %s204 = ssub.s32 %s18, 1
        %s205 = sand.u32 %s31, 1
        %s206 = scalar_lea.sflag [#allocation3], %s205
        %s207 = sand.u32 %s31, 1
        %s208 = smul.addr %s207, 8
        %s209 = scalar_lea.vmem [#allocation2], %s208
        // Predicated region
        $region33: #{tpu_custom_call.1} parent=31 // pred_check
          %p210 = pneg %p44
        $region34: #{tpu_custom_call.1} parent=31 // pred_check_branch
          %212 = sbr.rel (%p210) target = $region36
        $region35: #{tpu_custom_call.1} parent=31 // pred_region
          %213 = dma.done %s206, 128
        $region36: #{tpu_custom_call.1} parent=31 // pred_fallthru
          _
        %s214 = sand.u32 %s23, 1
        %s215 = scalar_lea.sflag [#allocation6], %s214
        %s216 = sand.u32 %s57, 1
        %s217 = smul.addr %s216, 16
        %s218 = scalar_lea.vmem [#allocation5], %s217
        // Predicated region
        $region37: #{tpu_custom_call.1} parent=31 // pred_check
          %p219 = pneg %p70
        $region38: #{tpu_custom_call.1} parent=31 // pred_check_branch
          %221 = sbr.rel (%p219) target = $region40
        $region39: #{tpu_custom_call.1} parent=31 // pred_region
          %222 = dma.done %s215, 256
        $region40: #{tpu_custom_call.1} parent=31 // pred_fallthru
          _
        %s223 = sand.u32 %s23, 1
        %s224 = scalar_lea.sflag [#allocation6], %s223
        %s225 = sand.u32 %s83, 1
        %s226 = smul.addr %s225, 8
        %s227 = scalar_lea.vmem [#allocation7], %s226
        // Predicated region
        $region41: #{tpu_custom_call.1} parent=31 // pred_check
          %p228 = pneg %p96
        $region42: #{tpu_custom_call.1} parent=31 // pred_check_branch
          %230 = sbr.rel (%p228) target = $region44
        $region43: #{tpu_custom_call.1} parent=31 // pred_region
          %231 = dma.done %s224, 128
        $region44: #{tpu_custom_call.1} parent=31 // pred_fallthru
          _
        %s232 = sand.u32 %s31, 1
        %s233 = scalar_lea.sflag [#allocation3], %s232
        %s234 = sand.u32 %s31, 1
        %s235 = smul.addr %s234, 8
        %s236 = scalar_lea.vmem [#allocation2], %s235
        %p237 = pneg %p44
        %p238 = pneg %p41
        %s239 = sand.u32 %s23, 1
        %s240 = scalar_lea.sflag [#allocation6], %s239
        %s241 = sand.u32 %s57, 1
        %s242 = smul.addr %s241, 16
        %s243 = scalar_lea.vmem [#allocation5], %s242
        %p244 = pneg %p70
        %p245 = pneg %p67
        %s246 = sand.u32 %s23, 1
        %s247 = scalar_lea.sflag [#allocation6], %s246
        %s248 = sand.u32 %s83, 1
        %s249 = smul.addr %s248, 8
        %s250 = scalar_lea.vmem [#allocation7], %s249
        %p251 = pneg %p96
        %p252 = pneg %p93
        %p253 = pneg %p122
        %p254 = pneg %p119
        %s255 = sand.u32 %s109, 1
        %s256 = scalar_lea.sflag [#allocation4], %s255
        %s257 = sand.u32 %s109, 1
        %s258 = smul.addr %s257, 32
        %s259 = scalar_lea.vmem [#allocation8], %s258
        %v260 = vld [vmem:[%s209] sm:$0xff]
        %v262 = vcombine.high %v260, %v260
        %264 = vst [vmem:[%s259] sm:$0xf] %v260
        %265 = vst [vmem:[%s259 + $0x8] sm:$0xf] %v262
        %v266 = vld [vmem:[%s218] sm:$0xff]
        %v267 = vld [vmem:[%s218 + $0x8] sm:$0xff]
        %v270 = vrot.slane %v266, 4
        %v271 = vrot.slane %v267, 4
        %274 = vst [vmem:[%s259] sm:$0xf0] %v270
        %275 = vst [vmem:[%s259 + $0x8] sm:$0xf0] %v271
        %276 = vst [vmem:[%s259 + $0x10] sm:$0xf] %v270
        %277 = vst [vmem:[%s259 + $0x18] sm:$0xf] %v271
        %v278 = vld [vmem:[%s227] sm:$0xff]
        %v280 = vcombine.low %v278, %v278
        %282 = vst [vmem:[%s259 + $0x10] sm:$0xf0] %v280
        %283 = vst [vmem:[%s259 + $0x18] sm:$0xf0] %v278
        %s284 = sand.u32 %s109, 1
        %s285 = scalar_lea.sflag [#allocation4], %s284
        %s286 = sand.u32 %s109, 1
        %s287 = smul.addr %s286, 32
        %s288 = scalar_lea.vmem [#allocation8], %s287
        // Predicated region
        $region45: #{tpu_custom_call.1} parent=31 // pred_check
          %p289 = pneg %p119
        $region46: #{tpu_custom_call.1} parent=31 // pred_check_branch
          %291 = sbr.rel (%p289) target = $region48
        $region47: #{tpu_custom_call.1} parent=31 // pred_region
          %s293 = ssub.s32 512, 512
          %294 = vsyncadd %s285, %s293
          %s295 = smul.addr %s23, 4
          %s296 = smul.addr %s295, 128
          %s297 = scalar_lea.hbm %s3, %s296
          %s298 = sshll.u32 %s288, 4
          %s299 = int_to_ptr.vmem [resolvable:$true] %s298
          %304 = dma.vmem_to_hbm [thread:$0]  %s299, 512, %s297, %s285, 256, 256, 16
        $region48: #{tpu_custom_call.1} parent=31 // pred_fallthru
          _
      $region32: #{tpu_custom_call.1} parent=5 // pred_fallthru
        _
      %p305 = scmp.le.s32.totalorder 2, %s18
      // Predicated region
      $region49: #{tpu_custom_call.1} parent=5 // pred_check
        %p306 = pneg %p305
      $region50: #{tpu_custom_call.1} parent=5 // pred_check_branch
        %308 = sbr.rel (%p306) target = $region52
      $region51: #{tpu_custom_call.1} parent=5 // pred_region
        %s309 = ssub.s32 %s18, 2
        // Predicated region
        $region53: #{tpu_custom_call.1} parent=51 // pred_check
          %p310 = pneg %p125
        $region54: #{tpu_custom_call.1} parent=51 // pred_check_branch
          %312 = sbr.rel (%p310) target = $region56
        $region55: #{tpu_custom_call.1} parent=51 // pred_region
          %s313 = sand.u32 %s110, 1
          %s314 = scalar_lea.sflag [#allocation4], %s313
          %s315 = sand.u32 %s110, 1
          %s316 = smul.addr %s315, 32
          %s317 = scalar_lea.vmem [#allocation8], %s316
          %318 = dma.done %s314, 512
        $region56: #{tpu_custom_call.1} parent=51 // pred_fallthru
          _
      $region52: #{tpu_custom_call.1} parent=5 // pred_fallthru
        _
    $region6: #{tpu_custom_call.1} parent=1 // loop_footer
      %s22 = sadd.s32 1, %s18
    $region7: #{tpu_custom_call.1} parent=1 // loop_footer_branch
      %17 = sbr.rel target = $region3
    $region8: #{tpu_custom_call.1} parent=1 // loop_exit
      _
    %319 = vsyncpa [#allocation3], 1
    %s320 = scalar_lea.sflag [#allocation3], 1
    %321 = vsyncpa %s320, 1
    %322 = vsyncpa [#allocation6], 1
    %s323 = scalar_lea.sflag [#allocation6], 1
    %324 = vsyncpa %s323, 1
    %325 = vsyncpa [#allocation4], 1
    %s326 = scalar_lea.sflag [#allocation4], 1
    %327 = vsyncpa %s326, 1

</llo_original>
